<compile_context>
chip_gen: v5e
topology: v5e:2x2
jax: 0.10.0
libtpu: 0.0.40
codegen_flags: <defaults>
</compile_context>

<pallas_src>
import jax
import jax.numpy as jnp
from jax.experimental import pallas as pl
from jax.experimental.pallas import tpu as pltpu


def ca_kernel(x_ref, w1t_ref, b1_ref, w2t_ref, b2_ref, o_ref):
    # x_ref block: (NB, C, HW) in the input dtype; HW is the lane axis.
    inv_hw = 1.0 / x_ref.shape[-1]

    # Global average pool over the spatial (lane) axis.  Widening reduce:
    # accumulation is f32 but no block-sized f32 copy of x is materialized.
    y = jnp.sum(x_ref[...], axis=-1, dtype=jnp.float32) * inv_hw        # (NB, C)
    # TODO(synk): on v7x consider moving this reduction onto the idle MXU
    # ((NB*C, HW) @ ones(HW, 1)); on v5e/v6e the XLU reduce is hidden under
    # the HBM DMA and the MXU variant needs a (NB*C,1)->(NB,C) relayout.

    # 1x1 conv #1 (C -> Cr): batched GEMM + bias + ReLU, all in f32.
    z1 = jnp.dot(y, w1t_ref[...],
                 preferred_element_type=jnp.float32) + b1_ref[...]      # (NB, Cr)
    z1 = jnp.maximum(z1, 0.0)

    # 1x1 conv #2 (Cr -> C): batched GEMM + bias + sigmoid.
    z2 = jnp.dot(z1, w2t_ref[...],
                 preferred_element_type=jnp.float32) + b2_ref[...]      # (NB, C)
    scale = jax.nn.sigmoid(z2)                                          # f32

    # Broadcast the per-(sample, channel) gate over spatial lanes.  x_ref is
    # re-read here (instead of keeping a full-block value live) so the
    # elementwise pass is a pure stream in the input dtype.
    o_ref[...] = (x_ref[...] *
                  scale.astype(o_ref.dtype)[:, :, None]).astype(o_ref.dtype)


def _tpu_vmem_and_cores():
    """Physical VMEM bytes and TensorCores per chip, with safe fallbacks."""
    vmem = None
    cores = None
    try:
        info = pltpu.get_tpu_info()
        for name in ("vmem_capacity_bytes", "vmem_bytes", "vmem_size_bytes"):
            val = getattr(info, name, None)
            if val:
                vmem = int(val)
                break
        for name in ("num_tensorcores", "tensorcore_count", "num_cores",
                     "cores_per_chip"):
            val = getattr(info, name, None)
            if val:
                cores = int(val)
                break
    except Exception:
        pass
    if vmem is None:
        vmem = 64 * 1024 * 1024       # conservative (v7x-sized) default
    if cores is None:
        cores = 1
    return vmem, cores


def _choose_nb(n, per_sample_bytes, block_budget_bytes, num_cores):
    """Samples per grid step: biggest VMEM-safe block that still pipelines."""
    total = n * per_sample_bytes
    # Tiny problem: one grid step beats per-step overhead on every generation.
    if n <= 1 or total <= (2 << 20):
        return n
    nb_max = max(1, block_budget_bytes // max(per_sample_bytes, 1))
    # Keep enough steps for pipeline overlap (and megacore sharding on
    # 2-TensorCore chips); otherwise grow the block to the VMEM budget.
    min_steps = 4 * max(num_cores, 1)
    target = max(1, min(nb_max, n // min_steps))
    if target <= 1:
        return 1
    # Largest divisor of n that is <= target: exact tiling, no zero-pad pass,
    # no ragged last block.  (For awkward prime-ish N, grid=pl.cdiv(N, nb)
    # with a masked ragged tail would also be correct.)
    best = 1
    d = 1
    while d * d <= n:
        if n % d == 0:
            if d <= target and d > best:
                best = d
            q = n // d
            if q <= target and q > best:
                best = q
        d += 1
    return best


def ca_layer_forward(x, w1, b1, w2, b2, *, nb=None):
    """x: (N, C, H, W) NCHW; w1: (Cr, C); b1: (Cr,); w2: (C, Cr); b2: (C,)."""
    N, C, H, W = x.shape
    Cr = w1.shape[0]
    HW = H * W
    x2 = x.reshape(N, C, HW)

    itemsize = jnp.dtype(x.dtype).itemsize
    per_sample = C * HW * itemsize

    vmem_phys, num_cores = _tpu_vmem_and_cores()
    # Per-generation block budget: ~16 MiB blocks on 128-MiB-VMEM chips
    # (v5e / v6e), ~8 MiB on 64-MiB-VMEM chips (v7x).
    block_budget = (16 << 20) if vmem_phys >= (128 << 20) else (8 << 20)

    if nb is None:
        nb = _choose_nb(N, per_sample, block_budget, num_cores)
    nb = max(1, min(int(nb), N))
    while N % nb:          # a user-supplied nb must still tile N exactly
        nb -= 1

    # Explicit scoped-VMEM limit: double-buffered in + out blocks (4x block)
    # + double-buffered weight/bias tiles + headroom for f32 temporaries.
    block_bytes = nb * per_sample
    weight_bytes = 2 * 4 * (C * Cr + Cr + Cr * C + C)
    vmem_limit = 4 * block_bytes + weight_bytes + (4 << 20)
    vmem_limit = int(min(max(vmem_limit, 16 << 20), int(vmem_phys * 0.75)))

    # Pre-transpose weights and make biases lane-major for the batched GEMMs.
    w1t = jnp.asarray(w1).T.astype(jnp.float32)       # (C, Cr)
    w2t = jnp.asarray(w2).T.astype(jnp.float32)       # (Cr, C)
    b1r = jnp.asarray(b1).reshape(1, Cr).astype(jnp.float32)
    b2r = jnp.asarray(b2).reshape(1, C).astype(jnp.float32)

    out = pl.pallas_call(
        ca_kernel,
        out_shape=jax.ShapeDtypeStruct((N, C, HW), x.dtype),
        grid=(N // nb,),
        in_specs=[
            pl.BlockSpec((nb, C, HW), lambda n: (n, 0, 0)),   # x (NB samples)
            pl.BlockSpec((C, Cr), lambda n: (0, 0)),          # W1^T
            pl.BlockSpec((1, Cr), lambda n: (0, 0)),          # b1 (lane-major)
            pl.BlockSpec((Cr, C), lambda n: (0, 0)),          # W2^T
            pl.BlockSpec((1, C), lambda n: (0, 0)),           # b2 (lane-major)
        ],
        out_specs=pl.BlockSpec((nb, C, HW), lambda n: (n, 0, 0)),
        compiler_params=pltpu.CompilerParams(
            dimension_semantics=("parallel",),
            vmem_limit_bytes=vmem_limit),
    )(x2, w1t, b1r, w2t, b2r)

    return out.reshape(N, C, H, W)


def ca_layer_reference(x, w1, b1, w2, b2):
    # Pure-JAX reference of the PyTorch forward, for verification.
    y = jnp.mean(x, axis=(2, 3), keepdims=True)              # (N, C, 1, 1)
    yv = y[:, :, 0, 0]                                        # (N, C)
    z1 = jnp.maximum(yv @ w1.T + b1, 0.0)                     # (N, Cr)
    z2 = jax.nn.sigmoid(z1 @ w2.T + b2)                       # (N, C)
    return x * z2[:, :, None, None]


if __name__ == "__main__":
    # Module config: channel=32, reduction=8 -> hidden Cr = 4.
    N, C, H, W = 8, 32, 16, 16
    reduction = 8
    Cr = C // reduction

    key = jax.random.PRNGKey(0)
    kx, kw1, kb1, kw2, kb2 = jax.random.split(key, 5)

    x = jax.random.normal(kx, (N, C, H, W), dtype=jnp.float32)
    # Conv2d(channel, channel//reduction, 1): weight (Cr, C, 1, 1) -> (Cr, C)
    w1 = 0.1 * jax.random.normal(kw1, (Cr, C), dtype=jnp.float32)
    b1 = 0.1 * jax.random.normal(kb1, (Cr,), dtype=jnp.float32)
    # Conv2d(channel//reduction, channel, 1): weight (C, Cr, 1, 1) -> (C, Cr)
    w2 = 0.1 * jax.random.normal(kw2, (C, Cr), dtype=jnp.float32)
    b2 = 0.1 * jax.random.normal(kb2, (C,), dtype=jnp.float32)

    out = ca_layer_forward(x, w1, b1, w2, b2)
    out = jax.block_until_ready(out)

    ref = ca_layer_reference(x, w1, b1, w2, b2)
    assert out.shape == (N, C, H, W)
    assert jnp.allclose(out, ref, atol=1e-5, rtol=1e-5), "mismatch vs reference"

    print("KERNEL_OK")
</pallas_src>

<mosaic_0001>
module attributes {stable_mosaic.version = 11 : i64} {
  func.func @ca_kernel(%arg0: i32, %arg1: memref<8x32x256xf32, #tpu.memory_space<vmem>>, %arg2: memref<32x4xf32, #tpu.memory_space<vmem>>, %arg3: memref<1x4xf32, #tpu.memory_space<vmem>>, %arg4: memref<4x32xf32, #tpu.memory_space<vmem>>, %arg5: memref<1x32xf32, #tpu.memory_space<vmem>>, %arg6: memref<8x32x256xf32, #tpu.memory_space<vmem>>) attributes {dimension_semantics = [#tpu.dimension_semantics<parallel>], iteration_bounds = array<i64: 1>, scalar_prefetch = 0 : i64, scratch_operands = 0 : i64, tpu.core_type = #tpu.core_type<tc>, window_params = [{transform_indices = @transform_0, window_bounds = array<i64: 8, 32, 256>}, {pipeline_mode = #tpu.pipeline_mode<synchronous>, transform_indices = @transform_1, window_bounds = array<i64: 32, 4>}, {pipeline_mode = #tpu.pipeline_mode<synchronous>, transform_indices = @transform_2, window_bounds = array<i64: 1, 4>}, {pipeline_mode = #tpu.pipeline_mode<synchronous>, transform_indices = @transform_3, window_bounds = array<i64: 4, 32>}, {pipeline_mode = #tpu.pipeline_mode<synchronous>, transform_indices = @transform_4, window_bounds = array<i64: 1, 32>}, {transform_indices = @transform_5, window_bounds = array<i64: 8, 32, 256>}]} {
    %c0 = arith.constant 0 : index
    %c0_0 = arith.constant 0 : index
    %c0_1 = arith.constant 0 : index
    %0 = vector.load %arg1[%c0, %c0_0, %c0_1] : memref<8x32x256xf32, #tpu.memory_space<vmem>>, vector<8x32x256xf32>
    %cst = arith.constant dense<0.000000e+00> : vector<8x32xf32>
    %1 = vector.multi_reduction <add>, %0, %cst [2] : vector<8x32x256xf32> to vector<8x32xf32>
    %cst_2 = arith.constant 3.906250e-03 : f32
    %2 = vector.broadcast %cst_2 : f32 to vector<8x32xf32>
    %3 = arith.mulf %1, %2 : vector<8x32xf32>
    %c0_3 = arith.constant 0 : index
    %c0_4 = arith.constant 0 : index
    %4 = vector.load %arg2[%c0_3, %c0_4] : memref<32x4xf32, #tpu.memory_space<vmem>>, vector<32x4xf32>
    %cst_5 = arith.constant dense<0.000000e+00> : vector<8x4xf32>
    %5 = tpu.matmul %3, %4, %cst_5 {dimension_numbers = #tpu.dot_dimension_numbers<[1], [0], [0], [1], [0, 0, 1, 1], [], []>} : vector<8x32xf32>, vector<32x4xf32>, vector<8x4xf32> -> vector<8x4xf32>
    %c0_6 = arith.constant 0 : index
    %c0_7 = arith.constant 0 : index
    %6 = vector.load %arg3[%c0_6, %c0_7] : memref<1x4xf32, #tpu.memory_space<vmem>>, vector<1x4xf32>
    %7 = vector.broadcast %6 : vector<1x4xf32> to vector<8x4xf32>
    %8 = arith.addf %5, %7 : vector<8x4xf32>
    %cst_8 = arith.constant 0.000000e+00 : f32
    %9 = vector.broadcast %cst_8 : f32 to vector<8x4xf32>
    %10 = arith.maximumf %8, %9 : vector<8x4xf32>
    %c0_9 = arith.constant 0 : index
    %c0_10 = arith.constant 0 : index
    %11 = vector.load %arg4[%c0_9, %c0_10] : memref<4x32xf32, #tpu.memory_space<vmem>>, vector<4x32xf32>
    %cst_11 = arith.constant dense<0.000000e+00> : vector<8x32xf32>
    %12 = tpu.matmul %10, %11, %cst_11 {dimension_numbers = #tpu.dot_dimension_numbers<[1], [0], [0], [1], [0, 0, 1, 1], [], []>} : vector<8x4xf32>, vector<4x32xf32>, vector<8x32xf32> -> vector<8x32xf32>
    %c0_12 = arith.constant 0 : index
    %c0_13 = arith.constant 0 : index
    %13 = vector.load %arg5[%c0_12, %c0_13] : memref<1x32xf32, #tpu.memory_space<vmem>>, vector<1x32xf32>
    %14 = vector.broadcast %13 : vector<1x32xf32> to vector<8x32xf32>
    %15 = arith.addf %12, %14 : vector<8x32xf32>
    %16 = arith.negf %15 : vector<8x32xf32>
    %17 = math.exp %16 : vector<8x32xf32>
    %cst_14 = arith.constant 1.000000e+00 : f32
    %18 = vector.broadcast %cst_14 : f32 to vector<8x32xf32>
    %19 = arith.addf %18, %17 : vector<8x32xf32>
    %20 = arith.divf %18, %19 : vector<8x32xf32>
    %c0_15 = arith.constant 0 : index
    %c0_16 = arith.constant 0 : index
    %c0_17 = arith.constant 0 : index
    %21 = vector.load %arg1[%c0_15, %c0_16, %c0_17] : memref<8x32x256xf32, #tpu.memory_space<vmem>>, vector<8x32x256xf32>
    %22 = vector.shape_cast %20 : vector<8x32xf32> to vector<8x32x1xf32>
    %23 = vector.broadcast %22 : vector<8x32x1xf32> to vector<8x32x256xf32>
    %24 = arith.mulf %21, %23 : vector<8x32x256xf32>
    %c0_18 = arith.constant 0 : index
    %c0_19 = arith.constant 0 : index
    %c0_20 = arith.constant 0 : index
    %25 = vector.load %arg6[%c0_18, %c0_19, %c0_20] : memref<8x32x256xf32, #tpu.memory_space<vmem>>, vector<8x32x256xf32>
    tpu.vector_store %arg6[%c0_18, %c0_19, %c0_20], %24 {strides = array<i32>} : memref<8x32x256xf32, #tpu.memory_space<vmem>>, vector<8x32x256xf32>,
    return
  }
  func.func @transform_0(%arg0: i32) -> (i32, i32, i32) {
    %c0_i32 = arith.constant 0 : i32
    %c0_i32_0 = arith.constant 0 : i32
    %c0_i32_1 = arith.constant 0 : i32
    return %arg0, %c0_i32, %c0_i32_0 : i32, i32, i32
  }
  func.func @transform_1(%arg0: i32) -> (i32, i32) {
    %c0_i32 = arith.constant 0 : i32
    %c0_i32_0 = arith.constant 0 : i32
    %c0_i32_1 = arith.constant 0 : i32
    return %c0_i32, %c0_i32_0 : i32, i32
  }
  func.func @transform_2(%arg0: i32) -> (i32, i32) {
    %c0_i32 = arith.constant 0 : i32
    %c0_i32_0 = arith.constant 0 : i32
    %c0_i32_1 = arith.constant 0 : i32
    return %c0_i32, %c0_i32_0 : i32, i32
  }
  func.func @transform_3(%arg0: i32) -> (i32, i32) {
    %c0_i32 = arith.constant 0 : i32
    %c0_i32_0 = arith.constant 0 : i32
    %c0_i32_1 = arith.constant 0 : i32
    return %c0_i32, %c0_i32_0 : i32, i32
  }
  func.func @transform_4(%arg0: i32) -> (i32, i32) {
    %c0_i32 = arith.constant 0 : i32
    %c0_i32_0 = arith.constant 0 : i32
    %c0_i32_1 = arith.constant 0 : i32
    return %c0_i32, %c0_i32_0 : i32, i32
  }
  func.func @transform_5(%arg0: i32) -> (i32, i32, i32) {
    %c0_i32 = arith.constant 0 : i32
    %c0_i32_0 = arith.constant 0 : i32
    %c0_i32_1 = arith.constant 0 : i32
    return %arg0, %c0_i32, %c0_i32_0 : i32, i32, i32
  }
}

</mosaic_0001>

<llo_original>
// kernel: tpu_custom_call.1
$region0: #{tpu_custom_call.1}
  #allocation0 [shape = 'u32[]', space=smem, size = 0x4, offset = 0x4, fixed_abs, tag = 'smem constant byte address 0x4 - core index']
  #allocation1 [shape = 'u32[72,128]{1,0:T(1,128)}', space=vmem, size = 0x9000, scoped, tag = 'internal scratch']
  %s0 = inlined_call_operand.hbm [shape: f32[8,32,256], index: 0, kind: input, shape index: {}]
  %s1 = inlined_call_operand.vmem [shape: f32[32,4], index: 1, kind: input, shape index: {}]
  %s2 = inlined_call_operand.vmem [shape: f32[1,4], index: 2, kind: input, shape index: {}]
  %s3 = inlined_call_operand.vmem [shape: f32[4,32], index: 3, kind: input, shape index: {}]
  %s4 = inlined_call_operand.vmem [shape: f32[1,32], index: 4, kind: input, shape index: {}]
  %s5 = inlined_call_operand.hbm [shape: f32[8,32,256], index: 5, kind: output, shape index: {}]
  %s6 = sld [smem:[#allocation0]]
  $region34: #{tpu_custom_call.1} parent=0
    _
  %s8 = ssub.s32 1, %s6
  %s9 = scalar_select 0, %s8, %s6
  $region1: #{tpu_custom_call.1} parent=0
    #allocation2 [shape = 'u8[262144]{0}', space=vmem, size = 0x40000, scoped, tag = 'input window, operand 0, single buffered']
    #allocation3 [shape = 's32[1]{0}', space=sflag, size = 0x4, scoped, tag = 'scoped memory for tpu_custom_call.1']
    #allocation4 [shape = 's32[1]{0}', space=sflag, size = 0x4, scoped, tag = 'scoped memory for tpu_custom_call.1']
    #allocation5 [shape = 'u8[262144]{0}', space=vmem, size = 0x40000, scoped, tag = 'output window, operand 0, single buffered']
    %10 = vsyncpa [#allocation3], 0
    %11 = vsyncpa [#allocation4], 0
    // Predicated region
    $region2: #{tpu_custom_call.1} parent=1 // pred_check
      _
    $region3: #{tpu_custom_call.1} parent=1 // pred_check_branch
      %13 = sbr.rel (0) target = $region5
    $region4: #{tpu_custom_call.1} parent=1 // pred_region
      %15 = vsyncadd [#allocation3], 0
      %s16 = sshll.u32 %s0, 4
      %s17 = int_to_ptr.hbm [resolvable:$true] %s16
      %s18 = sshll.u32 [#allocation2], 4
      %s19 = int_to_ptr.vmem [resolvable:$true] %s18
      %24 = dma.hbm_to_vmem [thread:$0]  %s17, 8192, %s19, [#allocation3], 256, 256, 16
    $region5: #{tpu_custom_call.1} parent=1 // pred_fallthru
      _
    // Predicated region
    $region6: #{tpu_custom_call.1} parent=1 // pred_check
      _
    $region7: #{tpu_custom_call.1} parent=1 // pred_check_branch
      %26 = sbr.rel (0) target = $region9
    $region8: #{tpu_custom_call.1} parent=1 // pred_region
      _
    $region9: #{tpu_custom_call.1} parent=1 // pred_fallthru
      _
    // Predicated region
    $region10: #{tpu_custom_call.1} parent=1 // pred_check
      _
    $region11: #{tpu_custom_call.1} parent=1 // pred_check_branch
      %28 = sbr.rel (0) target = $region13
    $region12: #{tpu_custom_call.1} parent=1 // pred_region
      _
    $region13: #{tpu_custom_call.1} parent=1 // pred_fallthru
      _
    // Predicated region
    $region14: #{tpu_custom_call.1} parent=1 // pred_check
      _
    $region15: #{tpu_custom_call.1} parent=1 // pred_check_branch
      %30 = sbr.rel (0) target = $region17
    $region16: #{tpu_custom_call.1} parent=1 // pred_region
      _
    $region17: #{tpu_custom_call.1} parent=1 // pred_fallthru
      _
    // Predicated region
    $region18: #{tpu_custom_call.1} parent=1 // pred_check
      _
    $region19: #{tpu_custom_call.1} parent=1 // pred_check_branch
      %32 = sbr.rel (0) target = $region21
    $region20: #{tpu_custom_call.1} parent=1 // pred_region
      _
    $region21: #{tpu_custom_call.1} parent=1 // pred_fallthru
      _
    // Predicated region
    $region22: #{tpu_custom_call.1} parent=1 // pred_check
      _
    $region23: #{tpu_custom_call.1} parent=1 // pred_check_branch
      %34 = sbr.rel (0) target = $region25
    $region24: #{tpu_custom_call.1} parent=1 // pred_region
      %36 = dma.done [#allocation3], 8192
    $region25: #{tpu_custom_call.1} parent=1 // pred_fallthru
      _
    %v37 = vld [vmem:[#allocation2] sm:$0xff]
    %v38 = vld [vmem:[#allocation2 + $0x8] sm:$0xff]
    %v39 = vld [vmem:[#allocation2 + $0x10] sm:$0xff]
    %v40 = vld [vmem:[#allocation2 + $0x18] sm:$0xff]
    %v41 = vld [vmem:[#allocation2 + $0x20] sm:$0xff]
    %v42 = vld [vmem:[#allocation2 + $0x28] sm:$0xff]
    %v43 = vld [vmem:[#allocation2 + $0x30] sm:$0xff]
    %v44 = vld [vmem:[#allocation2 + $0x38] sm:$0xff]
    %v45 = vld [vmem:[#allocation2 + $0x40] sm:$0xff]
    %v46 = vld [vmem:[#allocation2 + $0x48] sm:$0xff]
    %v47 = vld [vmem:[#allocation2 + $0x50] sm:$0xff]
    %v48 = vld [vmem:[#allocation2 + $0x58] sm:$0xff]
    %v49 = vld [vmem:[#allocation2 + $0x60] sm:$0xff]
    %v50 = vld [vmem:[#allocation2 + $0x68] sm:$0xff]
    %v51 = vld [vmem:[#allocation2 + $0x70] sm:$0xff]
    %v52 = vld [vmem:[#allocation2 + $0x78] sm:$0xff]
    %v53 = vld [vmem:[#allocation2 + $0x80] sm:$0xff]
    %v54 = vld [vmem:[#allocation2 + $0x88] sm:$0xff]
    %v55 = vld [vmem:[#allocation2 + $0x90] sm:$0xff]
    %v56 = vld [vmem:[#allocation2 + $0x98] sm:$0xff]
    %v57 = vld [vmem:[#allocation2 + $0xa0] sm:$0xff]
    %v58 = vld [vmem:[#allocation2 + $0xa8] sm:$0xff]
    %v59 = vld [vmem:[#allocation2 + $0xb0] sm:$0xff]
    %v60 = vld [vmem:[#allocation2 + $0xb8] sm:$0xff]
    %v61 = vld [vmem:[#allocation2 + $0xc0] sm:$0xff]
    %v62 = vld [vmem:[#allocation2 + $0xc8] sm:$0xff]
    %v63 = vld [vmem:[#allocation2 + $0xd0] sm:$0xff]
    %v64 = vld [vmem:[#allocation2 + $0xd8] sm:$0xff]
    %v65 = vld [vmem:[#allocation2 + $0xe0] sm:$0xff]
    %v66 = vld [vmem:[#allocation2 + $0xe8] sm:$0xff]
    %v67 = vld [vmem:[#allocation2 + $0xf0] sm:$0xff]
    %v68 = vld [vmem:[#allocation2 + $0xf8] sm:$0xff]
    %v69 = vld [vmem:[#allocation2 + $0x100] sm:$0xff]
    %v70 = vld [vmem:[#allocation2 + $0x108] sm:$0xff]
    %v71 = vld [vmem:[#allocation2 + $0x110] sm:$0xff]
    %v72 = vld [vmem:[#allocation2 + $0x118] sm:$0xff]
    %v73 = vld [vmem:[#allocation2 + $0x120] sm:$0xff]
    %v74 = vld [vmem:[#allocation2 + $0x128] sm:$0xff]
    %v75 = vld [vmem:[#allocation2 + $0x130] sm:$0xff]
    %v76 = vld [vmem:[#allocation2 + $0x138] sm:$0xff]
    %v77 = vld [vmem:[#allocation2 + $0x140] sm:$0xff]
    %v78 = vld [vmem:[#allocation2 + $0x148] sm:$0xff]
    %v79 = vld [vmem:[#allocation2 + $0x150] sm:$0xff]
    %v80 = vld [vmem:[#allocation2 + $0x158] sm:$0xff]
    %v81 = vld [vmem:[#allocation2 + $0x160] sm:$0xff]
    %v82 = vld [vmem:[#allocation2 + $0x168] sm:$0xff]
    %v83 = vld [vmem:[#allocation2 + $0x170] sm:$0xff]
    %v84 = vld [vmem:[#allocation2 + $0x178] sm:$0xff]
    %v85 = vld [vmem:[#allocation2 + $0x180] sm:$0xff]
    %v86 = vld [vmem:[#allocation2 + $0x188] sm:$0xff]
    %v87 = vld [vmem:[#allocation2 + $0x190] sm:$0xff]
    %v88 = vld [vmem:[#allocation2 + $0x198] sm:$0xff]
    %v89 = vld [vmem:[#allocation2 + $0x1a0] sm:$0xff]
    %v90 = vld [vmem:[#allocation2 + $0x1a8] sm:$0xff]
    %v91 = vld [vmem:[#allocation2 + $0x1b0] sm:$0xff]
    %v92 = vld [vmem:[#allocation2 + $0x1b8] sm:$0xff]
    %v93 = vld [vmem:[#allocation2 + $0x1c0] sm:$0xff]
    %v94 = vld [vmem:[#allocation2 + $0x1c8] sm:$0xff]
    %v95 = vld [vmem:[#allocation2 + $0x1d0] sm:$0xff]
    %v96 = vld [vmem:[#allocation2 + $0x1d8] sm:$0xff]
    %v97 = vld [vmem:[#allocation2 + $0x1e0] sm:$0xff]
    %v98 = vld [vmem:[#allocation2 + $0x1e8] sm:$0xff]
    %v99 = vld [vmem:[#allocation2 + $0x1f0] sm:$0xff]
    %v100 = vld [vmem:[#allocation2 + $0x1f8] sm:$0xff]
    %v101 = vadd.f32 %v37, %v38
    %102 = vadd.xlane.f32.xlu0 %v101
    %v103 = vpop.xlane.xlu0 %102
    %v104 = vadd.f32 %v39, %v40
    %105 = vadd.xlane.f32.xlu0 %v104
    %v106 = vpop.xlane.xlu0 %105
    %v107 = vadd.f32 %v41, %v42
    %108 = vadd.xlane.f32.xlu0 %v107
    %v109 = vpop.xlane.xlu0 %108
    %v110 = vadd.f32 %v43, %v44
    %111 = vadd.xlane.f32.xlu0 %v110
    %v112 = vpop.xlane.xlu0 %111
    %v113 = vadd.f32 %v45, %v46
    %114 = vadd.xlane.f32.xlu0 %v113
    %v115 = vpop.xlane.xlu0 %114
    %v116 = vadd.f32 %v47, %v48
    %117 = vadd.xlane.f32.xlu0 %v116
    %v118 = vpop.xlane.xlu0 %117
    %v119 = vadd.f32 %v49, %v50
    %120 = vadd.xlane.f32.xlu0 %v119
    %v121 = vpop.xlane.xlu0 %120
    %v122 = vadd.f32 %v51, %v52
    %123 = vadd.xlane.f32.xlu0 %v122
    %v124 = vpop.xlane.xlu0 %123
    %v125 = vadd.f32 %v53, %v54
    %126 = vadd.xlane.f32.xlu0 %v125
    %v127 = vpop.xlane.xlu0 %126
    %v128 = vadd.f32 %v55, %v56
    %129 = vadd.xlane.f32.xlu0 %v128
    %v130 = vpop.xlane.xlu0 %129
    %v131 = vadd.f32 %v57, %v58
    %132 = vadd.xlane.f32.xlu0 %v131
    %v133 = vpop.xlane.xlu0 %132
    %v134 = vadd.f32 %v59, %v60
    %135 = vadd.xlane.f32.xlu0 %v134
    %v136 = vpop.xlane.xlu0 %135
    %v137 = vadd.f32 %v61, %v62
    %138 = vadd.xlane.f32.xlu0 %v137
    %v139 = vpop.xlane.xlu0 %138
    %v140 = vadd.f32 %v63, %v64
    %141 = vadd.xlane.f32.xlu0 %v140
    %v142 = vpop.xlane.xlu0 %141
    %v143 = vadd.f32 %v65, %v66
    %144 = vadd.xlane.f32.xlu0 %v143
    %v145 = vpop.xlane.xlu0 %144
    %v146 = vadd.f32 %v67, %v68
    %147 = vadd.xlane.f32.xlu0 %v146
    %v148 = vpop.xlane.xlu0 %147
    %v149 = vadd.f32 %v69, %v70
    %150 = vadd.xlane.f32.xlu0 %v149
    %v151 = vpop.xlane.xlu0 %150
    %v152 = vadd.f32 %v71, %v72
    %153 = vadd.xlane.f32.xlu0 %v152
    %v154 = vpop.xlane.xlu0 %153
    %v155 = vadd.f32 %v73, %v74
    %156 = vadd.xlane.f32.xlu0 %v155
    %v157 = vpop.xlane.xlu0 %156
    %v158 = vadd.f32 %v75, %v76
    %159 = vadd.xlane.f32.xlu0 %v158
    %v160 = vpop.xlane.xlu0 %159
    %v161 = vadd.f32 %v77, %v78
    %162 = vadd.xlane.f32.xlu0 %v161
    %v163 = vpop.xlane.xlu0 %162
    %v164 = vadd.f32 %v79, %v80
    %165 = vadd.xlane.f32.xlu0 %v164
    %v166 = vpop.xlane.xlu0 %165
    %v167 = vadd.f32 %v81, %v82
    %168 = vadd.xlane.f32.xlu0 %v167
    %v169 = vpop.xlane.xlu0 %168
    %v170 = vadd.f32 %v83, %v84
    %171 = vadd.xlane.f32.xlu0 %v170
    %v172 = vpop.xlane.xlu0 %171
    %v173 = vadd.f32 %v85, %v86
    %174 = vadd.xlane.f32.xlu0 %v173
    %v175 = vpop.xlane.xlu0 %174
    %v176 = vadd.f32 %v87, %v88
    %177 = vadd.xlane.f32.xlu0 %v176
    %v178 = vpop.xlane.xlu0 %177
    %v179 = vadd.f32 %v89, %v90
    %180 = vadd.xlane.f32.xlu0 %v179
    %v181 = vpop.xlane.xlu0 %180
    %v182 = vadd.f32 %v91, %v92
    %183 = vadd.xlane.f32.xlu0 %v182
    %v184 = vpop.xlane.xlu0 %183
    %v185 = vadd.f32 %v93, %v94
    %186 = vadd.xlane.f32.xlu0 %v185
    %v187 = vpop.xlane.xlu0 %186
    %v188 = vadd.f32 %v95, %v96
    %189 = vadd.xlane.f32.xlu0 %v188
    %v190 = vpop.xlane.xlu0 %189
    %v191 = vadd.f32 %v97, %v98
    %192 = vadd.xlane.f32.xlu0 %v191
    %v193 = vpop.xlane.xlu0 %192
    %v194 = vadd.f32 %v99, %v100
    %195 = vadd.xlane.f32.xlu0 %v194
    %v196 = vpop.xlane.xlu0 %195
    %v197 = vmul.f32 %v103, 0.00390625
    %v198 = vmul.f32 %v106, 0.00390625
    %v199 = vmul.f32 %v109, 0.00390625
    %v200 = vmul.f32 %v112, 0.00390625
    %v201 = vmul.f32 %v115, 0.00390625
    %v202 = vmul.f32 %v118, 0.00390625
    %v203 = vmul.f32 %v121, 0.00390625
    %v204 = vmul.f32 %v124, 0.00390625
    %v205 = vmul.f32 %v127, 0.00390625
    %v206 = vmul.f32 %v130, 0.00390625
    %v207 = vmul.f32 %v133, 0.00390625
    %v208 = vmul.f32 %v136, 0.00390625
    %v209 = vmul.f32 %v139, 0.00390625
    %v210 = vmul.f32 %v142, 0.00390625
    %v211 = vmul.f32 %v145, 0.00390625
    %v212 = vmul.f32 %v148, 0.00390625
    %v213 = vmul.f32 %v151, 0.00390625
    %v214 = vmul.f32 %v154, 0.00390625
    %v215 = vmul.f32 %v157, 0.00390625
    %v216 = vmul.f32 %v160, 0.00390625
    %v217 = vmul.f32 %v163, 0.00390625
    %v218 = vmul.f32 %v166, 0.00390625
    %v219 = vmul.f32 %v169, 0.00390625
    %v220 = vmul.f32 %v172, 0.00390625
    %v221 = vmul.f32 %v175, 0.00390625
    %v222 = vmul.f32 %v178, 0.00390625
    %v223 = vmul.f32 %v181, 0.00390625
    %v224 = vmul.f32 %v184, 0.00390625
    %v225 = vmul.f32 %v187, 0.00390625
    %v226 = vmul.f32 %v190, 0.00390625
    %v227 = vmul.f32 %v193, 0.00390625
    %v228 = vmul.f32 %v196, 0.00390625
    %v229 = vld [vmem:[%s1] sm:$0xff]
    %v230 = vld [vmem:[%s1 + $0x8] sm:$0xff]
    %v231 = vld [vmem:[%s1 + $0x10] sm:$0xff]
    %v232 = vld [vmem:[%s1 + $0x18] sm:$0xff]
    %v233 = vld [vmem:[%s2] sm:$0x1]
    %v235 = vperm.slane %v233, 0
    %v269 = vlaneseq
    %v270 = vand.u32 %v269, 127
    %v271 = vperm.slane %v197, %v270
    %v272 = vadd.s32 %v270, 4294967288
    %v273 = vperm.slane %v198, %v272
    %vm274 = vcmask 130112
    %v275 = vsel %vm274, %v273, %v271
    %v276 = vadd.s32 %v270, 4294967280
    %v277 = vperm.slane %v199, %v276
    %vm278 = vcmask 195712
    %v279 = vsel %vm278, %v277, %v275
    %v280 = vadd.s32 %v270, 4294967272
    %v281 = vperm.slane %v200, %v280
    %vm282 = vcmask 261312
    %v283 = vsel %vm282, %v281, %v279
    %v284 = vperm.slane %v201, %v270
    %v285 = vperm.slane %v202, %v272
    %v286 = vsel %vm274, %v285, %v284
    %v287 = vperm.slane %v203, %v276
    %v288 = vsel %vm278, %v287, %v286
    %v289 = vperm.slane %v204, %v280
    %v290 = vsel %vm282, %v289, %v288
    %v291 = vperm.slane %v205, %v270
    %v292 = vperm.slane %v206, %v272
    %v293 = vsel %vm274, %v292, %v291
    %v294 = vperm.slane %v207, %v276
    %v295 = vsel %vm278, %v294, %v293
    %v296 = vperm.slane %v208, %v280
    %v297 = vsel %vm282, %v296, %v295
    %v298 = vperm.slane %v209, %v270
    %v299 = vperm.slane %v210, %v272
    %v300 = vsel %vm274, %v299, %v298
    %v301 = vperm.slane %v211, %v276
    %v302 = vsel %vm278, %v301, %v300
    %v303 = vperm.slane %v212, %v280
    %v304 = vsel %vm282, %v303, %v302
    %v305 = vperm.slane %v213, %v270
    %v306 = vperm.slane %v214, %v272
    %v307 = vsel %vm274, %v306, %v305
    %v308 = vperm.slane %v215, %v276
    %v309 = vsel %vm278, %v308, %v307
    %v310 = vperm.slane %v216, %v280
    %v311 = vsel %vm282, %v310, %v309
    %v312 = vperm.slane %v217, %v270
    %v313 = vperm.slane %v218, %v272
    %v314 = vsel %vm274, %v313, %v312
    %v315 = vperm.slane %v219, %v276
    %v316 = vsel %vm278, %v315, %v314
    %v317 = vperm.slane %v220, %v280
    %v318 = vsel %vm282, %v317, %v316
    %v319 = vperm.slane %v221, %v270
    %v320 = vperm.slane %v222, %v272
    %v321 = vsel %vm274, %v320, %v319
    %v322 = vperm.slane %v223, %v276
    %v323 = vsel %vm278, %v322, %v321
    %v324 = vperm.slane %v224, %v280
    %v325 = vsel %vm282, %v324, %v323
    %v326 = vperm.slane %v225, %v270
    %v327 = vperm.slane %v226, %v272
    %v328 = vsel %vm274, %v327, %v326
    %v329 = vperm.slane %v227, %v276
    %v330 = vsel %vm278, %v329, %v328
    %v331 = vperm.slane %v228, %v280
    %v332 = vsel %vm282, %v331, %v330
    %vm333 = vcmask 1041409
    %v334 = vsel %vm333, %v290, %v283
    %vm335 = vcmask 1042434
    %v336 = vsel %vm335, %v297, %v334
    %vm337 = vcmask 1043459
    %v338 = vsel %vm337, %v304, %v336
    %vm339 = vcmask 1044484
    %v340 = vsel %vm339, %v311, %v338
    %vm341 = vcmask 1045509
    %v342 = vsel %vm341, %v318, %v340
    %vm343 = vcmask 1046534
    %v344 = vsel %vm343, %v325, %v342
    %vm345 = vcmask 1047559
    %v346 = vsel %vm345, %v332, %v344
    %vm347 = vcmask 261120
    %v348 = vsel %vm347, %v346, 0
    %350 = vmatpush.msra.mxu0 0.0
    %351 = vmatpush.msra.mxu0 0.0
    %352 = vmatpush.msra.mxu0 0.0
    %353 = vmatpush.msra.mxu0 0.0
    %354 = vmatpush.msra.mxu0 0.0
    %355 = vmatpush.msra.mxu0 0.0
    %356 = vmatpush.msra.mxu0 0.0
    %357 = vmatpush.msra.mxu0 0.0
    %358 = vmatpush.msra.mxu0 0.0
    %359 = vmatpush.msra.mxu0 0.0
    %360 = vmatpush.msra.mxu0 0.0
    %361 = vmatpush.msra.mxu0 0.0
    %362 = vmatpush.msra.mxu0 %v232
    %363 = vmatpush.msra.mxu0 %v231
    %364 = vmatpush.msra.mxu0 %v230
    %365 = vmatpush.msra.mxu0 %v229
    %366 = vmatmul.f32.gmra.mxu0 %v348
    %v367 = vpop.f32.mrf.mxu0
    %v368 = vadd.f32 %v235, %v367
    %369 = vdwg.mxu0
    %v370 = vmax.f32 %v368, 0.0
    %v371 = vld [vmem:[%s3] sm:$0xf]
    %v372 = vld [vmem:[%s4] sm:$0x1]
    %v374 = vperm.slane %v372, 0
    %vm376 = vcmask 31744
    %v378 = vsel %vm376, %v370, 0
    %vm380 = vcmask 1043456
    %v382 = vsel %vm380, %v371, 0
    %384 = vmatpush.msra.mxu0 0.0
    %385 = vmatpush.msra.mxu0 0.0
    %386 = vmatpush.msra.mxu0 0.0
    %387 = vmatpush.msra.mxu0 0.0
    %388 = vmatpush.msra.mxu0 0.0
    %389 = vmatpush.msra.mxu0 0.0
    %390 = vmatpush.msra.mxu0 0.0
    %391 = vmatpush.msra.mxu0 0.0
    %392 = vmatpush.msra.mxu0 0.0
    %393 = vmatpush.msra.mxu0 0.0
    %394 = vmatpush.msra.mxu0 0.0
    %395 = vmatpush.msra.mxu0 0.0
    %396 = vmatpush.msra.mxu0 0.0
    %397 = vmatpush.msra.mxu0 0.0
    %398 = vmatpush.msra.mxu0 0.0
    %399 = vmatpush.msra.mxu0 %v382
    %400 = vmatmul.f32.gmra.mxu0 %v378
    %v401 = vpop.f32.mrf.mxu0
    %v402 = vadd.f32 %v374, %v401
    %403 = vdwg.mxu0
    %v404 = vxor.u32 %v402, 2147483648
    %v405 = vmul.f32 %v404, 1.442695
    %v406 = vpow.pop %v405
    %v407 = vadd.f32 %v406, 1.0
    %v408 = vrcp.pop %v407
    %v409 = vmul.f32 %v407, %v408
    %v410 = vsub.f32 1.0, %v409
    %v411 = vmul.f32 %v408, %v410
    %v412 = vadd.f32 %v408, %v411
    %vm413 = vweird.f32 %v407
    %vm414 = vweird.f32 %v408
    %vm415 = vmor %vm413, %vm414
    %v416 = vsel %vm415, %v408, %v412
    %v417 = vand.u32 2147483647, %v407
    %vm418 = vcmp.eq.f32.partialorder %v417, 8.507059e+37
    %v419 = vand.u32 %v407, 2147483648
    %v420 = vor.u32 1.1754944e-38, %v419
    %v421 = vsel %vm418, %v420, %v416
    %v422 = vmul.f32 1.0, %v421
    %v423 = vperm.slane %v422, 0
    %v424 = vlaneseq
    %v425 = vshrl.u32 %v424, 7
    %427 = vset.pattern.permute.xlu0 %v425
    %428 = vperm.xlu0 %427, %v423
    %v429 = vpop.permute.xlu0 %428
    %v430 = vlaneseq
    %v431 = vshrl.u32 %v430, 7
    %v432 = vadd.s32 %v431, 8
    %433 = vset.pattern.permute.xlu0 %v432
    %434 = vperm.xlu0 %433, %v423
    %v435 = vpop.permute.xlu0 %434
    %v436 = vlaneseq
    %v437 = vshrl.u32 %v436, 7
    %v438 = vadd.s32 %v437, 16
    %439 = vset.pattern.permute.xlu0 %v438
    %440 = vperm.xlu0 %439, %v423
    %v441 = vpop.permute.xlu0 %440
    %v442 = vlaneseq
    %v443 = vshrl.u32 %v442, 7
    %v444 = vadd.s32 %v443, 24
    %445 = vset.pattern.permute.xlu0 %v444
    %446 = vperm.xlu0 %445, %v423
    %v447 = vpop.permute.xlu0 %446
    %v448 = vperm.slane %v422, 1
    %v449 = vlaneseq
    %v450 = vshrl.u32 %v449, 7
    %452 = vset.pattern.permute.xlu0 %v450
    %453 = vperm.xlu0 %452, %v448
    %v454 = vpop.permute.xlu0 %453
    %v455 = vlaneseq
    %v456 = vshrl.u32 %v455, 7
    %v457 = vadd.s32 %v456, 8
    %458 = vset.pattern.permute.xlu0 %v457
    %459 = vperm.xlu0 %458, %v448
    %v460 = vpop.permute.xlu0 %459
    %v461 = vlaneseq
    %v462 = vshrl.u32 %v461, 7
    %v463 = vadd.s32 %v462, 16
    %464 = vset.pattern.permute.xlu0 %v463
    %465 = vperm.xlu0 %464, %v448
    %v466 = vpop.permute.xlu0 %465
    %v467 = vlaneseq
    %v468 = vshrl.u32 %v467, 7
    %v469 = vadd.s32 %v468, 24
    %470 = vset.pattern.permute.xlu0 %v469
    %471 = vperm.xlu0 %470, %v448
    %v472 = vpop.permute.xlu0 %471
    %v473 = vperm.slane %v422, 2
    %v474 = vlaneseq
    %v475 = vshrl.u32 %v474, 7
    %477 = vset.pattern.permute.xlu0 %v475
    %478 = vperm.xlu0 %477, %v473
    %v479 = vpop.permute.xlu0 %478
    %v480 = vlaneseq
    %v481 = vshrl.u32 %v480, 7
    %v482 = vadd.s32 %v481, 8
    %483 = vset.pattern.permute.xlu0 %v482
    %484 = vperm.xlu0 %483, %v473
    %v485 = vpop.permute.xlu0 %484
    %v486 = vlaneseq
    %v487 = vshrl.u32 %v486, 7
    %v488 = vadd.s32 %v487, 16
    %489 = vset.pattern.permute.xlu0 %v488
    %490 = vperm.xlu0 %489, %v473
    %v491 = vpop.permute.xlu0 %490
    %v492 = vlaneseq
    %v493 = vshrl.u32 %v492, 7
    %v494 = vadd.s32 %v493, 24
    %495 = vset.pattern.permute.xlu0 %v494
    %496 = vperm.xlu0 %495, %v473
    %v497 = vpop.permute.xlu0 %496
    %v498 = vperm.slane %v422, 3
    %v499 = vlaneseq
    %v500 = vshrl.u32 %v499, 7
    %502 = vset.pattern.permute.xlu0 %v500
    %503 = vperm.xlu0 %502, %v498
    %v504 = vpop.permute.xlu0 %503
    %v505 = vlaneseq
    %v506 = vshrl.u32 %v505, 7
    %v507 = vadd.s32 %v506, 8
    %508 = vset.pattern.permute.xlu0 %v507
    %509 = vperm.xlu0 %508, %v498
    %v510 = vpop.permute.xlu0 %509
    %v511 = vlaneseq
    %v512 = vshrl.u32 %v511, 7
    %v513 = vadd.s32 %v512, 16
    %514 = vset.pattern.permute.xlu0 %v513
    %515 = vperm.xlu0 %514, %v498
    %v516 = vpop.permute.xlu0 %515
    %v517 = vlaneseq
    %v518 = vshrl.u32 %v517, 7
    %v519 = vadd.s32 %v518, 24
    %520 = vset.pattern.permute.xlu0 %v519
    %521 = vperm.xlu0 %520, %v498
    %v522 = vpop.permute.xlu0 %521
    %v523 = vperm.slane %v422, 4
    %v524 = vlaneseq
    %v525 = vshrl.u32 %v524, 7
    %527 = vset.pattern.permute.xlu0 %v525
    %528 = vperm.xlu0 %527, %v523
    %v529 = vpop.permute.xlu0 %528
    %v530 = vlaneseq
    %v531 = vshrl.u32 %v530, 7
    %v532 = vadd.s32 %v531, 8
    %533 = vset.pattern.permute.xlu0 %v532
    %534 = vperm.xlu0 %533, %v523
    %v535 = vpop.permute.xlu0 %534
    %v536 = vlaneseq
    %v537 = vshrl.u32 %v536, 7
    %v538 = vadd.s32 %v537, 16
    %539 = vset.pattern.permute.xlu0 %v538
    %540 = vperm.xlu0 %539, %v523
    %v541 = vpop.permute.xlu0 %540
    %v542 = vlaneseq
    %v543 = vshrl.u32 %v542, 7
    %v544 = vadd.s32 %v543, 24
    %545 = vset.pattern.permute.xlu0 %v544
    %546 = vperm.xlu0 %545, %v523
    %v547 = vpop.permute.xlu0 %546
    %v548 = vperm.slane %v422, 5
    %v549 = vlaneseq
    %v550 = vshrl.u32 %v549, 7
    %552 = vset.pattern.permute.xlu0 %v550
    %553 = vperm.xlu0 %552, %v548
    %v554 = vpop.permute.xlu0 %553
    %v555 = vlaneseq
    %v556 = vshrl.u32 %v555, 7
    %v557 = vadd.s32 %v556, 8
    %558 = vset.pattern.permute.xlu0 %v557
    %559 = vperm.xlu0 %558, %v548
    %v560 = vpop.permute.xlu0 %559
    %v561 = vlaneseq
    %v562 = vshrl.u32 %v561, 7
    %v563 = vadd.s32 %v562, 16
    %564 = vset.pattern.permute.xlu0 %v563
    %565 = vperm.xlu0 %564, %v548
    %v566 = vpop.permute.xlu0 %565
    %v567 = vlaneseq
    %v568 = vshrl.u32 %v567, 7
    %v569 = vadd.s32 %v568, 24
    %570 = vset.pattern.permute.xlu0 %v569
    %571 = vperm.xlu0 %570, %v548
    %v572 = vpop.permute.xlu0 %571
    %v573 = vperm.slane %v422, 6
    %v574 = vlaneseq
    %v575 = vshrl.u32 %v574, 7
    %577 = vset.pattern.permute.xlu0 %v575
    %578 = vperm.xlu0 %577, %v573
    %v579 = vpop.permute.xlu0 %578
    %v580 = vlaneseq
    %v581 = vshrl.u32 %v580, 7
    %v582 = vadd.s32 %v581, 8
    %583 = vset.pattern.permute.xlu0 %v582
    %584 = vperm.xlu0 %583, %v573
    %v585 = vpop.permute.xlu0 %584
    %v586 = vlaneseq
    %v587 = vshrl.u32 %v586, 7
    %v588 = vadd.s32 %v587, 16
    %589 = vset.pattern.permute.xlu0 %v588
    %590 = vperm.xlu0 %589, %v573
    %v591 = vpop.permute.xlu0 %590
    %v592 = vlaneseq
    %v593 = vshrl.u32 %v592, 7
    %v594 = vadd.s32 %v593, 24
    %595 = vset.pattern.permute.xlu0 %v594
    %596 = vperm.xlu0 %595, %v573
    %v597 = vpop.permute.xlu0 %596
    %v598 = vperm.slane %v422, 7
    %v599 = vlaneseq
    %v600 = vshrl.u32 %v599, 7
    %602 = vset.pattern.permute.xlu0 %v600
    %603 = vperm.xlu0 %602, %v598
    %v604 = vpop.permute.xlu0 %603
    %v605 = vlaneseq
    %v606 = vshrl.u32 %v605, 7
    %v607 = vadd.s32 %v606, 8
    %608 = vset.pattern.permute.xlu0 %v607
    %609 = vperm.xlu0 %608, %v598
    %v610 = vpop.permute.xlu0 %609
    %v611 = vlaneseq
    %v612 = vshrl.u32 %v611, 7
    %v613 = vadd.s32 %v612, 16
    %614 = vset.pattern.permute.xlu0 %v613
    %615 = vperm.xlu0 %614, %v598
    %v616 = vpop.permute.xlu0 %615
    %v617 = vlaneseq
    %v618 = vshrl.u32 %v617, 7
    %v619 = vadd.s32 %v618, 24
    %620 = vset.pattern.permute.xlu0 %v619
    %621 = vperm.xlu0 %620, %v598
    %v622 = vpop.permute.xlu0 %621
    %v623 = vmul.f32 %v37, %v429
    %v624 = vmul.f32 %v38, %v429
    %v625 = vmul.f32 %v39, %v435
    %v626 = vmul.f32 %v40, %v435
    %v627 = vmul.f32 %v41, %v441
    %v628 = vmul.f32 %v42, %v441
    %v629 = vmul.f32 %v43, %v447
    %v630 = vmul.f32 %v44, %v447
    %v631 = vmul.f32 %v45, %v454
    %v632 = vmul.f32 %v46, %v454
    %v633 = vmul.f32 %v47, %v460
    %v634 = vmul.f32 %v48, %v460
    %v635 = vmul.f32 %v49, %v466
    %v636 = vmul.f32 %v50, %v466
    %v637 = vmul.f32 %v51, %v472
    %v638 = vmul.f32 %v52, %v472
    %v639 = vmul.f32 %v53, %v479
    %v640 = vmul.f32 %v54, %v479
    %v641 = vmul.f32 %v55, %v485
    %v642 = vmul.f32 %v56, %v485
    %v643 = vmul.f32 %v57, %v491
    %v644 = vmul.f32 %v58, %v491
    %v645 = vmul.f32 %v59, %v497
    %v646 = vmul.f32 %v60, %v497
    %v647 = vmul.f32 %v61, %v504
    %v648 = vmul.f32 %v62, %v504
    %v649 = vmul.f32 %v63, %v510
    %v650 = vmul.f32 %v64, %v510
    %v651 = vmul.f32 %v65, %v516
    %v652 = vmul.f32 %v66, %v516
    %v653 = vmul.f32 %v67, %v522
    %v654 = vmul.f32 %v68, %v522
    %v655 = vmul.f32 %v69, %v529
    %v656 = vmul.f32 %v70, %v529
    %v657 = vmul.f32 %v71, %v535
    %v658 = vmul.f32 %v72, %v535
    %v659 = vmul.f32 %v73, %v541
    %v660 = vmul.f32 %v74, %v541
    %v661 = vmul.f32 %v75, %v547
    %v662 = vmul.f32 %v76, %v547
    %v663 = vmul.f32 %v77, %v554
    %v664 = vmul.f32 %v78, %v554
    %v665 = vmul.f32 %v79, %v560
    %v666 = vmul.f32 %v80, %v560
    %v667 = vmul.f32 %v81, %v566
    %v668 = vmul.f32 %v82, %v566
    %v669 = vmul.f32 %v83, %v572
    %v670 = vmul.f32 %v84, %v572
    %v671 = vmul.f32 %v85, %v579
    %v672 = vmul.f32 %v86, %v579
    %v673 = vmul.f32 %v87, %v585
    %v674 = vmul.f32 %v88, %v585
    %v675 = vmul.f32 %v89, %v591
    %v676 = vmul.f32 %v90, %v591
    %v677 = vmul.f32 %v91, %v597
    %v678 = vmul.f32 %v92, %v597
    %v679 = vmul.f32 %v93, %v604
    %v680 = vmul.f32 %v94, %v604
    %v681 = vmul.f32 %v95, %v610
    %v682 = vmul.f32 %v96, %v610
    %v683 = vmul.f32 %v97, %v616
    %v684 = vmul.f32 %v98, %v616
    %v685 = vmul.f32 %v99, %v622
    %v686 = vmul.f32 %v100, %v622
    %687 = vst [vmem:[#allocation5] sm:$0xff] %v623
    %688 = vst [vmem:[#allocation5 + $0x8] sm:$0xff] %v624
    %689 = vst [vmem:[#allocation5 + $0x10] sm:$0xff] %v625
    %690 = vst [vmem:[#allocation5 + $0x18] sm:$0xff] %v626
    %691 = vst [vmem:[#allocation5 + $0x20] sm:$0xff] %v627
    %692 = vst [vmem:[#allocation5 + $0x28] sm:$0xff] %v628
    %693 = vst [vmem:[#allocation5 + $0x30] sm:$0xff] %v629
    %694 = vst [vmem:[#allocation5 + $0x38] sm:$0xff] %v630
    %695 = vst [vmem:[#allocation5 + $0x40] sm:$0xff] %v631
    %696 = vst [vmem:[#allocation5 + $0x48] sm:$0xff] %v632
    %697 = vst [vmem:[#allocation5 + $0x50] sm:$0xff] %v633
    %698 = vst [vmem:[#allocation5 + $0x58] sm:$0xff] %v634
    %699 = vst [vmem:[#allocation5 + $0x60] sm:$0xff] %v635
    %700 = vst [vmem:[#allocation5 + $0x68] sm:$0xff] %v636
    %701 = vst [vmem:[#allocation5 + $0x70] sm:$0xff] %v637
    %702 = vst [vmem:[#allocation5 + $0x78] sm:$0xff] %v638
    %703 = vst [vmem:[#allocation5 + $0x80] sm:$0xff] %v639
    %704 = vst [vmem:[#allocation5 + $0x88] sm:$0xff] %v640
    %705 = vst [vmem:[#allocation5 + $0x90] sm:$0xff] %v641
    %706 = vst [vmem:[#allocation5 + $0x98] sm:$0xff] %v642
    %707 = vst [vmem:[#allocation5 + $0xa0] sm:$0xff] %v643
    %708 = vst [vmem:[#allocation5 + $0xa8] sm:$0xff] %v644
    %709 = vst [vmem:[#allocation5 + $0xb0] sm:$0xff] %v645
    %710 = vst [vmem:[#allocation5 + $0xb8] sm:$0xff] %v646
    %711 = vst [vmem:[#allocation5 + $0xc0] sm:$0xff] %v647
    %712 = vst [vmem:[#allocation5 + $0xc8] sm:$0xff] %v648
    %713 = vst [vmem:[#allocation5 + $0xd0] sm:$0xff] %v649
    %714 = vst [vmem:[#allocation5 + $0xd8] sm:$0xff] %v650
    %715 = vst [vmem:[#allocation5 + $0xe0] sm:$0xff] %v651
    %716 = vst [vmem:[#allocation5 + $0xe8] sm:$0xff] %v652
    %717 = vst [vmem:[#allocation5 + $0xf0] sm:$0xff] %v653
    %718 = vst [vmem:[#allocation5 + $0xf8] sm:$0xff] %v654
    %719 = vst [vmem:[#allocation5 + $0x100] sm:$0xff] %v655
    %720 = vst [vmem:[#allocation5 + $0x108] sm:$0xff] %v656
    %721 = vst [vmem:[#allocation5 + $0x110] sm:$0xff] %v657
    %722 = vst [vmem:[#allocation5 + $0x118] sm:$0xff] %v658
    %723 = vst [vmem:[#allocation5 + $0x120] sm:$0xff] %v659
    %724 = vst [vmem:[#allocation5 + $0x128] sm:$0xff] %v660
    %725 = vst [vmem:[#allocation5 + $0x130] sm:$0xff] %v661
    %726 = vst [vmem:[#allocation5 + $0x138] sm:$0xff] %v662
    %727 = vst [vmem:[#allocation5 + $0x140] sm:$0xff] %v663
    %728 = vst [vmem:[#allocation5 + $0x148] sm:$0xff] %v664
    %729 = vst [vmem:[#allocation5 + $0x150] sm:$0xff] %v665
    %730 = vst [vmem:[#allocation5 + $0x158] sm:$0xff] %v666
    %731 = vst [vmem:[#allocation5 + $0x160] sm:$0xff] %v667
    %732 = vst [vmem:[#allocation5 + $0x168] sm:$0xff] %v668
    %733 = vst [vmem:[#allocation5 + $0x170] sm:$0xff] %v669
    %734 = vst [vmem:[#allocation5 + $0x178] sm:$0xff] %v670
    %735 = vst [vmem:[#allocation5 + $0x180] sm:$0xff] %v671
    %736 = vst [vmem:[#allocation5 + $0x188] sm:$0xff] %v672
    %737 = vst [vmem:[#allocation5 + $0x190] sm:$0xff] %v673
    %738 = vst [vmem:[#allocation5 + $0x198] sm:$0xff] %v674
    %739 = vst [vmem:[#allocation5 + $0x1a0] sm:$0xff] %v675
    %740 = vst [vmem:[#allocation5 + $0x1a8] sm:$0xff] %v676
    %741 = vst [vmem:[#allocation5 + $0x1b0] sm:$0xff] %v677
    %742 = vst [vmem:[#allocation5 + $0x1b8] sm:$0xff] %v678
    %743 = vst [vmem:[#allocation5 + $0x1c0] sm:$0xff] %v679
    %744 = vst [vmem:[#allocation5 + $0x1c8] sm:$0xff] %v680
    %745 = vst [vmem:[#allocation5 + $0x1d0] sm:$0xff] %v681
    %746 = vst [vmem:[#allocation5 + $0x1d8] sm:$0xff] %v682
    %747 = vst [vmem:[#allocation5 + $0x1e0] sm:$0xff] %v683
    %748 = vst [vmem:[#allocation5 + $0x1e8] sm:$0xff] %v684
    %749 = vst [vmem:[#allocation5 + $0x1f0] sm:$0xff] %v685
    %750 = vst [vmem:[#allocation5 + $0x1f8] sm:$0xff] %v686
    // Predicated region
    $region26: #{tpu_custom_call.1} parent=1 // pred_check
      _
    $region27: #{tpu_custom_call.1} parent=1 // pred_check_branch
      %752 = sbr.rel (0) target = $region29
    $region28: #{tpu_custom_call.1} parent=1 // pred_region
      %754 = vsyncadd [#allocation4], 0
      %s755 = sshll.u32 [#allocation5], 4
      %s756 = int_to_ptr.vmem [resolvable:$true] %s755
      %s757 = sshll.u32 %s5, 4
      %s758 = int_to_ptr.hbm [resolvable:$true] %s757
      %763 = dma.vmem_to_hbm [thread:$0]  %s756, 8192, %s758, [#allocation4], 256, 256, 16
    $region29: #{tpu_custom_call.1} parent=1 // pred_fallthru
      _
    // Predicated region
    $region30: #{tpu_custom_call.1} parent=1 // pred_check
      _
    $region31: #{tpu_custom_call.1} parent=1 // pred_check_branch
      %765 = sbr.rel (0) target = $region33
    $region32: #{tpu_custom_call.1} parent=1 // pred_region
      %767 = dma.done [#allocation4], 8192
    $region33: #{tpu_custom_call.1} parent=1 // pred_fallthru
      _
    %768 = vsyncpa [#allocation3], 1
    %769 = vsyncpa [#allocation4], 1

</llo_original>
